<compile_context>
chip_gen: v6e
topology: v6e:2x2x1
jax: 0.10.0
libtpu: 0.0.40
codegen_flags: <defaults>
</compile_context>

<pallas_src>
import functools

import jax
import jax.numpy as jnp
from jax.experimental import pallas as pl
from jax.experimental.pallas import tpu as pltpu


def _round_up(x: int, m: int) -> int:
    return (x + m - 1) // m * m


def mlp_kernel(x_ref, w1_ref, b1_ref, w2_ref, b2_ref, o_ref):
    # hidden = sigmoid(x @ W1 + b1) : bf16 x bf16 -> f32 acc on MXU, f32 elementwise.
    h = jnp.dot(x_ref[...], w1_ref[...], preferred_element_type=jnp.float32)
    h = jax.nn.sigmoid(h + b1_ref[...])          # (TM, H_pad) + (1, H_pad)
    # out = sigmoid(h @ W2 + b2) : cast hidden to bf16 for MXU throughput, f32 acc.
    y = jnp.dot(h.astype(w2_ref.dtype), w2_ref[...],
                preferred_element_type=jnp.float32)
    y = y + b2_ref[...]                          # (TM, D_out_pad) + (1, D_out_pad)
    o_ref[...] = jax.nn.sigmoid(y).astype(o_ref.dtype)


@functools.partial(jax.jit, static_argnames=("tm",))
def mlp_forward(x, w1, b1, w2, b2, *, tm: int = 128):
    """x: (B, D_in) f32. w1: (D_in, H), b1: (1, H), w2: (H, D_out), b2: (1, D_out)."""
    B, D_in = x.shape
    H = w1.shape[1]
    D_out = w2.shape[1]

    # Lane-pad hidden / output dims to 128 multiples; pad batch to a TM multiple.
    H_pad = _round_up(H, 128)
    D_out_pad = _round_up(D_out, 128)
    tm_eff = min(tm, _round_up(B, 8))
    B_pad = _round_up(B, tm_eff)

    # Zero-padding keeps numerics identical: padded hidden columns are sigmoid(0)=0.5,
    # but the corresponding (zero) rows of W2_pad annihilate them in the second matmul.
    bf16 = jnp.bfloat16
    x_p = jnp.zeros((B_pad, D_in), bf16).at[:B, :].set(x.astype(bf16))
    w1_p = jnp.zeros((D_in, H_pad), bf16).at[:, :H].set(w1.astype(bf16))
    b1_p = jnp.zeros((1, H_pad), jnp.float32).at[:, :H].set(b1)
    w2_p = jnp.zeros((H_pad, D_out_pad), bf16).at[:H, :D_out].set(w2.astype(bf16))
    b2_p = jnp.zeros((1, D_out_pad), jnp.float32).at[:, :D_out].set(b2)

    grid = (B_pad // tm_eff,)

    out_pad = pl.pallas_call(
        mlp_kernel,
        out_shape=jax.ShapeDtypeStruct((B_pad, D_out_pad), jnp.float32),
        grid=grid,
        in_specs=[
            # x: tiled along the batch; auto double-buffered by the pipeline.
            pl.BlockSpec((tm_eff, D_in), lambda i: (i, 0)),
            # Weights / biases: same block every step -> stay resident in VMEM.
            pl.BlockSpec((D_in, H_pad), lambda i: (0, 0)),
            pl.BlockSpec((1, H_pad), lambda i: (0, 0)),
            pl.BlockSpec((H_pad, D_out_pad), lambda i: (0, 0)),
            pl.BlockSpec((1, D_out_pad), lambda i: (0, 0)),
        ],
        out_specs=pl.BlockSpec((tm_eff, D_out_pad), lambda i: (i, 0)),
        compiler_params=pltpu.CompilerParams(
            # Batch tiles are independent -> shard across TCs on v7x megacore.
            dimension_semantics=("parallel",),
            # Tiny footprint (< 1 MiB); 32 MiB scoped limit is safe on v5e/v6e/v7x.
            vmem_limit_bytes=32 * 1024 * 1024,
        ),
    )(x_p, w1_p, b1_p, w2_p, b2_p)

    return out_pad[:B, :D_out]


def init_params(key, D_in, H, D_out):
    """Deterministic init mimicking nn.Linear's U(-1/sqrt(fan_in), 1/sqrt(fan_in))."""
    k1, k2, k3, k4 = jax.random.split(key, 4)
    bound1 = 1.0 / jnp.sqrt(D_in)
    bound2 = 1.0 / jnp.sqrt(H)
    # Stored transposed relative to PyTorch: (in_features, out_features)
    w1 = jax.random.uniform(k1, (D_in, H), jnp.float32, -bound1, bound1)
    b1 = jax.random.uniform(k2, (1, H), jnp.float32, -bound1, bound1)
    w2 = jax.random.uniform(k3, (H, D_out), jnp.float32, -bound2, bound2)
    b2 = jax.random.uniform(k4, (1, D_out), jnp.float32, -bound2, bound2)
    return w1, b1, w2, b2


if __name__ == "__main__":
    # Small shapes consistent with Net(D_in, H, D_out); batch big enough to exercise
    # the M-tiled grid (grid=(2,) at TM=128).
    B, D_in, H, D_out = 256, 32, 64, 16

    key = jax.random.PRNGKey(0)
    kx, kp = jax.random.split(key)
    x = jax.random.normal(kx, (B, D_in), dtype=jnp.float32)
    w1, b1, w2, b2 = init_params(kp, D_in, H, D_out)

    out = mlp_forward(x, w1, b1, w2, b2, tm=128)
    out = jax.block_until_ready(out)
    assert out.shape == (B, D_out)

    # Reference in plain JAX, mirroring the kernel's bf16-input / f32-accumulate path.
    xb = x.astype(jnp.bfloat16).astype(jnp.float32)
    w1b = w1.astype(jnp.bfloat16).astype(jnp.float32)
    w2b = w2.astype(jnp.bfloat16).astype(jnp.float32)
    h_ref = jax.nn.sigmoid(xb @ w1b + b1)
    h_ref = h_ref.astype(jnp.bfloat16).astype(jnp.float32)
    ref = jax.nn.sigmoid(h_ref @ w2b + b2)
    assert jnp.allclose(out, ref, atol=1e-2, rtol=1e-2)

    # Sanity vs the full-f32 model (bf16 rounding only).
    ref_f32 = jax.nn.sigmoid(jax.nn.sigmoid(x @ w1 + b1) @ w2 + b2)
    assert jnp.allclose(out, ref_f32, atol=3e-2, rtol=3e-2)

    print("KERNEL_OK")
</pallas_src>

<mosaic_0001>
module attributes {stable_mosaic.version = 11 : i64} {
  func.func @mlp_kernel(%arg0: i32, %arg1: memref<128x32xbf16, #tpu.memory_space<vmem>>, %arg2: memref<32x128xbf16, #tpu.memory_space<vmem>>, %arg3: memref<1x128xf32, #tpu.memory_space<vmem>>, %arg4: memref<128x128xbf16, #tpu.memory_space<vmem>>, %arg5: memref<1x128xf32, #tpu.memory_space<vmem>>, %arg6: memref<128x128xf32, #tpu.memory_space<vmem>>) attributes {dimension_semantics = [#tpu.dimension_semantics<parallel>], iteration_bounds = array<i64: 2>, scalar_prefetch = 0 : i64, scratch_operands = 0 : i64, tpu.core_type = #tpu.core_type<tc>, window_params = [{transform_indices = @transform_0, window_bounds = array<i64: 128, 32>}, {pipeline_mode = #tpu.pipeline_mode<synchronous>, transform_indices = @transform_1, window_bounds = array<i64: 32, 128>}, {pipeline_mode = #tpu.pipeline_mode<synchronous>, transform_indices = @transform_2, window_bounds = array<i64: 1, 128>}, {pipeline_mode = #tpu.pipeline_mode<synchronous>, transform_indices = @transform_3, window_bounds = array<i64: 128, 128>}, {pipeline_mode = #tpu.pipeline_mode<synchronous>, transform_indices = @transform_4, window_bounds = array<i64: 1, 128>}, {transform_indices = @transform_5, window_bounds = array<i64: 128, 128>}]} {
    %c0 = arith.constant 0 : index
    %c0_0 = arith.constant 0 : index
    %0 = vector.load %arg1[%c0, %c0_0] : memref<128x32xbf16, #tpu.memory_space<vmem>>, vector<128x32xbf16>
    %c0_1 = arith.constant 0 : index
    %c0_2 = arith.constant 0 : index
    %1 = vector.load %arg2[%c0_1, %c0_2] : memref<32x128xbf16, #tpu.memory_space<vmem>>, vector<32x128xbf16>
    %cst = arith.constant dense<0.000000e+00> : vector<128x128xf32>
    %2 = tpu.matmul %0, %1, %cst {dimension_numbers = #tpu.dot_dimension_numbers<[1], [0], [0], [1], [0, 0, 1, 1], [], []>} : vector<128x32xbf16>, vector<32x128xbf16>, vector<128x128xf32> -> vector<128x128xf32>
    %c0_3 = arith.constant 0 : index
    %c0_4 = arith.constant 0 : index
    %3 = vector.load %arg3[%c0_3, %c0_4] : memref<1x128xf32, #tpu.memory_space<vmem>>, vector<1x128xf32>
    %4 = vector.broadcast %3 : vector<1x128xf32> to vector<128x128xf32>
    %5 = arith.addf %2, %4 : vector<128x128xf32>
    %6 = arith.negf %5 : vector<128x128xf32>
    %7 = math.exp %6 : vector<128x128xf32>
    %cst_5 = arith.constant 1.000000e+00 : f32
    %8 = vector.broadcast %cst_5 : f32 to vector<128x128xf32>
    %9 = arith.addf %8, %7 : vector<128x128xf32>
    %10 = arith.divf %8, %9 : vector<128x128xf32>
    %11 = arith.truncf %10 : vector<128x128xf32> to vector<128x128xbf16>
    %c0_6 = arith.constant 0 : index
    %c0_7 = arith.constant 0 : index
    %12 = vector.load %arg4[%c0_6, %c0_7] : memref<128x128xbf16, #tpu.memory_space<vmem>>, vector<128x128xbf16>
    %cst_8 = arith.constant dense<0.000000e+00> : vector<128x128xf32>
    %13 = tpu.matmul %11, %12, %cst_8 {dimension_numbers = #tpu.dot_dimension_numbers<[1], [0], [0], [1], [0, 0, 1, 1], [], []>} : vector<128x128xbf16>, vector<128x128xbf16>, vector<128x128xf32> -> vector<128x128xf32>
    %c0_9 = arith.constant 0 : index
    %c0_10 = arith.constant 0 : index
    %14 = vector.load %arg5[%c0_9, %c0_10] : memref<1x128xf32, #tpu.memory_space<vmem>>, vector<1x128xf32>
    %15 = vector.broadcast %14 : vector<1x128xf32> to vector<128x128xf32>
    %16 = arith.addf %13, %15 : vector<128x128xf32>
    %17 = arith.negf %16 : vector<128x128xf32>
    %18 = math.exp %17 : vector<128x128xf32>
    %cst_11 = arith.constant 1.000000e+00 : f32
    %19 = vector.broadcast %cst_11 : f32 to vector<128x128xf32>
    %20 = arith.addf %19, %18 : vector<128x128xf32>
    %21 = arith.divf %19, %20 : vector<128x128xf32>
    %c0_12 = arith.constant 0 : index
    %c0_13 = arith.constant 0 : index
    %22 = vector.load %arg6[%c0_12, %c0_13] : memref<128x128xf32, #tpu.memory_space<vmem>>, vector<128x128xf32>
    tpu.vector_store %arg6[%c0_12, %c0_13], %21 {strides = array<i32>} : memref<128x128xf32, #tpu.memory_space<vmem>>, vector<128x128xf32>,
    return
  }
  func.func @transform_0(%arg0: i32) -> (i32, i32) {
    %c0_i32 = arith.constant 0 : i32
    %c0_i32_0 = arith.constant 0 : i32
    return %arg0, %c0_i32 : i32, i32
  }
  func.func @transform_1(%arg0: i32) -> (i32, i32) {
    %c0_i32 = arith.constant 0 : i32
    %c0_i32_0 = arith.constant 0 : i32
    %c0_i32_1 = arith.constant 0 : i32
    return %c0_i32, %c0_i32_0 : i32, i32
  }
  func.func @transform_2(%arg0: i32) -> (i32, i32) {
    %c0_i32 = arith.constant 0 : i32
    %c0_i32_0 = arith.constant 0 : i32
    %c0_i32_1 = arith.constant 0 : i32
    return %c0_i32, %c0_i32_0 : i32, i32
  }
  func.func @transform_3(%arg0: i32) -> (i32, i32) {
    %c0_i32 = arith.constant 0 : i32
    %c0_i32_0 = arith.constant 0 : i32
    %c0_i32_1 = arith.constant 0 : i32
    return %c0_i32, %c0_i32_0 : i32, i32
  }
  func.func @transform_4(%arg0: i32) -> (i32, i32) {
    %c0_i32 = arith.constant 0 : i32
    %c0_i32_0 = arith.constant 0 : i32
    %c0_i32_1 = arith.constant 0 : i32
    return %c0_i32, %c0_i32_0 : i32, i32
  }
  func.func @transform_5(%arg0: i32) -> (i32, i32) {
    %c0_i32 = arith.constant 0 : i32
    %c0_i32_0 = arith.constant 0 : i32
    return %arg0, %c0_i32 : i32, i32
  }
}

</mosaic_0001>

<llo_original>
// kernel: mlp_forward.1
$region0: #{mlp_forward.1}
  #allocation0 [shape = 'u32[]', space=smem, size = 0x4, offset = 0x4, fixed_abs, tag = 'smem constant byte address 0x4 - core index']
  #allocation1 [shape = 'u32[144,128]{1,0:T(1,128)}', space=vmem, size = 0x12000, scoped, tag = 'internal scratch']
  %s0 = inlined_call_operand.vmem [shape: bf16[256,32], index: 0, kind: input, shape index: {}]
  %s1 = inlined_call_operand.vmem [shape: bf16[32,128], index: 1, kind: input, shape index: {}]
  %s2 = inlined_call_operand.vmem [shape: f32[1,128], index: 2, kind: input, shape index: {}]
  %s3 = inlined_call_operand.vmem [shape: bf16[128,128], index: 3, kind: input, shape index: {}]
  %s4 = inlined_call_operand.vmem [shape: f32[1,128], index: 4, kind: input, shape index: {}]
  %s5 = inlined_call_operand.vmem [shape: f32[256,128], index: 5, kind: output, shape index: {}]
  %s6 = sld [smem:[#allocation0]]
  $region53: #{mlp_forward.1} parent=0
    _
  %s8 = ssub.s32 1, %s6
  %s9 = scalar_select 0, %s8, %s6
  loop: start=0, step=1, limit=4
  $region2: #{mlp_forward.1} parent=0 // loop_pre_header
    _
  $region3: #{mlp_forward.1} parent=0 // loop_header
    %s11 = sphi 0, %s15
    %p12 = scmp.ge.s32.totalorder %s11, 4
    %s21 = sphi 0, %s23
    %s24 = sphi 0, %s21
    %s25 = sphi 0, %s24
    %s41 = sphi 0, %s25
    %s45 = sphi 0, %s45
    %s47 = sphi 0, %s45
    %s48 = sphi 0, %s47
    %s62 = sphi 0, %s48
    %s66 = sphi 0, %s66
    %s68 = sphi 0, %s66
    %s69 = sphi 0, %s68
    %s83 = sphi 0, %s69
    %s87 = sphi 0, %s87
    %s89 = sphi 0, %s87
    %s90 = sphi 0, %s89
    %s104 = sphi 0, %s90
    %s108 = sphi 0, %s108
    %s110 = sphi 0, %s108
    %s111 = sphi 0, %s110
    %s125 = sphi 0, %s111
    %s131 = sphi 0, %s133
    %s134 = sphi 0, %s131
    %s135 = sphi 0, %s134
    %s151 = sphi 0, %s135
  $region4: #{mlp_forward.1} parent=0 // loop_header_branch
    %14 = sbr.rel (%p12) target = $region8
  $region5: #{mlp_forward.1} parent=0 // loop_body
    %s16 = ssub.s32 %s11, 1
    %s17 = ssub.s32 %s11, 2
    %s18 = sadd.s32 %s11, 1
    %s19 = ssub.s32 %s11, %s18
    %p20 = scmp.eq.s32.totalorder %s19, 0
    %s22 = sadd.s32 %s21, 1
    %s23 = scalar_select %p20, %s21, %s22
    %p26 = pneg %p20
    %p27 = scmp.eq.s32.totalorder %s11, 1
    %p28 = por %p26, %p27
    %p29 = scmp.ne.s32.totalorder %s21, %s24
    %p30 = scmp.eq.s32.totalorder %s11, 0
    %p31 = por %p29, %p30
    %p32 = scmp.ne.s32.totalorder %s21, %s24
    %p33 = scmp.eq.s32.totalorder %s16, 1
    %p34 = por %p32, %p33
    %p35 = scmp.ne.s32.totalorder %s24, %s25
    %p36 = scmp.eq.s32.totalorder %s16, 0
    %p37 = por %p35, %p36
    %p38 = scmp.ne.s32.totalorder %s24, %s25
    %p39 = scmp.eq.s32.totalorder %s17, 1
    %p40 = por %p38, %p39
    %p42 = scmp.ne.s32.totalorder %s25, %s41
    %p43 = scmp.eq.s32.totalorder %s17, 0
    %p44 = por %p42, %p43
    %s46 = sadd.s32 %s45, 1
    %p49 = scmp.eq.s32.totalorder %s11, 1
    %p50 = scmp.ne.s32.totalorder %s45, %s47
    %p51 = scmp.eq.s32.totalorder %s11, 0
    %p52 = por %p50, %p51
    %p53 = scmp.ne.s32.totalorder %s45, %s47
    %p54 = scmp.eq.s32.totalorder %s16, 1
    %p55 = por %p53, %p54
    %p56 = scmp.ne.s32.totalorder %s47, %s48
    %p57 = scmp.eq.s32.totalorder %s16, 0
    %p58 = por %p56, %p57
    %p59 = scmp.ne.s32.totalorder %s47, %s48
    %p60 = scmp.eq.s32.totalorder %s17, 1
    %p61 = por %p59, %p60
    %p63 = scmp.ne.s32.totalorder %s48, %s62
    %p64 = scmp.eq.s32.totalorder %s17, 0
    %p65 = por %p63, %p64
    %s67 = sadd.s32 %s66, 1
    %p70 = scmp.eq.s32.totalorder %s11, 1
    %p71 = scmp.ne.s32.totalorder %s66, %s68
    %p72 = scmp.eq.s32.totalorder %s11, 0
    %p73 = por %p71, %p72
    %p74 = scmp.ne.s32.totalorder %s66, %s68
    %p75 = scmp.eq.s32.totalorder %s16, 1
    %p76 = por %p74, %p75
    %p77 = scmp.ne.s32.totalorder %s68, %s69
    %p78 = scmp.eq.s32.totalorder %s16, 0
    %p79 = por %p77, %p78
    %p80 = scmp.ne.s32.totalorder %s68, %s69
    %p81 = scmp.eq.s32.totalorder %s17, 1
    %p82 = por %p80, %p81
    %p84 = scmp.ne.s32.totalorder %s69, %s83
    %p85 = scmp.eq.s32.totalorder %s17, 0
    %p86 = por %p84, %p85
    %s88 = sadd.s32 %s87, 1
    %p91 = scmp.eq.s32.totalorder %s11, 1
    %p92 = scmp.ne.s32.totalorder %s87, %s89
    %p93 = scmp.eq.s32.totalorder %s11, 0
    %p94 = por %p92, %p93
    %p95 = scmp.ne.s32.totalorder %s87, %s89
    %p96 = scmp.eq.s32.totalorder %s16, 1
    %p97 = por %p95, %p96
    %p98 = scmp.ne.s32.totalorder %s89, %s90
    %p99 = scmp.eq.s32.totalorder %s16, 0
    %p100 = por %p98, %p99
    %p101 = scmp.ne.s32.totalorder %s89, %s90
    %p102 = scmp.eq.s32.totalorder %s17, 1
    %p103 = por %p101, %p102
    %p105 = scmp.ne.s32.totalorder %s90, %s104
    %p106 = scmp.eq.s32.totalorder %s17, 0
    %p107 = por %p105, %p106
    %s109 = sadd.s32 %s108, 1
    %p112 = scmp.eq.s32.totalorder %s11, 1
    %p113 = scmp.ne.s32.totalorder %s108, %s110
    %p114 = scmp.eq.s32.totalorder %s11, 0
    %p115 = por %p113, %p114
    %p116 = scmp.ne.s32.totalorder %s108, %s110
    %p117 = scmp.eq.s32.totalorder %s16, 1
    %p118 = por %p116, %p117
    %p119 = scmp.ne.s32.totalorder %s110, %s111
    %p120 = scmp.eq.s32.totalorder %s16, 0
    %p121 = por %p119, %p120
    %p122 = scmp.ne.s32.totalorder %s110, %s111
    %p123 = scmp.eq.s32.totalorder %s17, 1
    %p124 = por %p122, %p123
    %p126 = scmp.ne.s32.totalorder %s111, %s125
    %p127 = scmp.eq.s32.totalorder %s17, 0
    %p128 = por %p126, %p127
    %s129 = ssub.s32 %s11, %s18
    %p130 = scmp.eq.s32.totalorder %s129, 0
    %s132 = sadd.s32 %s131, 1
    %s133 = scalar_select %p130, %s131, %s132
    %p136 = pneg %p130
    %p137 = scmp.eq.s32.totalorder %s11, 1
    %p138 = por %p136, %p137
    %p139 = scmp.ne.s32.totalorder %s131, %s134
    %p140 = scmp.eq.s32.totalorder %s11, 0
    %p141 = por %p139, %p140
    %p142 = scmp.ne.s32.totalorder %s131, %s134
    %p143 = scmp.eq.s32.totalorder %s16, 1
    %p144 = por %p142, %p143
    %p145 = scmp.ne.s32.totalorder %s134, %s135
    %p146 = scmp.eq.s32.totalorder %s16, 0
    %p147 = por %p145, %p146
    %p148 = scmp.ne.s32.totalorder %s134, %s135
    %p149 = scmp.eq.s32.totalorder %s17, 1
    %p150 = por %p148, %p149
    %p152 = scmp.ne.s32.totalorder %s135, %s151
    %p153 = scmp.eq.s32.totalorder %s17, 0
    %p154 = por %p152, %p153
    %p155 = scmp.le.s32.totalorder 1, %s11
    %p156 = scmp.lt.s32.totalorder %s11, 3
    %p157 = pnand %p155, %p156
    %p158 = pneg %p157
    // Predicated region
    $region9: #{mlp_forward.1} parent=5 // pred_check
      _
    $region10: #{mlp_forward.1} parent=5 // pred_check_branch
      %160 = sbr.rel (%p157) target = $region12
    $region11: #{mlp_forward.1} parent=5 // pred_region
      %s161 = ssub.s32 %s11, 1
      // Predicated region
      $region13: #{mlp_forward.1} parent=11 // pred_check
        %p162 = pneg %p58
      $region14: #{mlp_forward.1} parent=11 // pred_check_branch
        %164 = sbr.rel (%p162) target = $region16
      $region15: #{mlp_forward.1} parent=11 // pred_region
        _
      $region16: #{mlp_forward.1} parent=11 // pred_fallthru
        _
      // Predicated region
      $region17: #{mlp_forward.1} parent=11 // pred_check
        %p165 = pneg %p79
      $region18: #{mlp_forward.1} parent=11 // pred_check_branch
        %167 = sbr.rel (%p165) target = $region20
      $region19: #{mlp_forward.1} parent=11 // pred_region
        _
      $region20: #{mlp_forward.1} parent=11 // pred_fallthru
        _
      // Predicated region
      $region21: #{mlp_forward.1} parent=11 // pred_check
        %p168 = pneg %p100
      $region22: #{mlp_forward.1} parent=11 // pred_check_branch
        %170 = sbr.rel (%p168) target = $region24
      $region23: #{mlp_forward.1} parent=11 // pred_region
        _
      $region24: #{mlp_forward.1} parent=11 // pred_fallthru
        _
      // Predicated region
      $region25: #{mlp_forward.1} parent=11 // pred_check
        %p171 = pneg %p121
      $region26: #{mlp_forward.1} parent=11 // pred_check_branch
        %173 = sbr.rel (%p171) target = $region28
      $region27: #{mlp_forward.1} parent=11 // pred_region
        _
      $region28: #{mlp_forward.1} parent=11 // pred_fallthru
        _
    $region12: #{mlp_forward.1} parent=5 // pred_fallthru
      _
    %p174 = scmp.lt.s32.totalorder %s11, 2
    // Predicated region
    $region29: #{mlp_forward.1} parent=5 // pred_check
      %p175 = pneg %p174
    $region30: #{mlp_forward.1} parent=5 // pred_check_branch
      %177 = sbr.rel (%p175) target = $region32
    $region31: #{mlp_forward.1} parent=5 // pred_region
      // Predicated region
      $region33: #{mlp_forward.1} parent=31 // pred_check
        %p178 = pneg %p31
      $region34: #{mlp_forward.1} parent=31 // pred_check_branch
        %180 = sbr.rel (%p178) target = $region36
      $region35: #{mlp_forward.1} parent=31 // pred_region
        %s181 = smul.u32 16, %s11
        %p182 = scmp.lt.s32.totalorder %s181, 31
        %s183 = scalar_select %p182, %s181, 31
        %s184 = smul.addr %s183, 4
        %s185 = scalar_lea.vmem %s0, %s184
        %s186 = smul.u32 16, %s11
      $region36: #{mlp_forward.1} parent=31 // pred_fallthru
        _
    $region32: #{mlp_forward.1} parent=5 // pred_fallthru
      _
    %p187 = scmp.le.s32.totalorder 1, %s11
    %p188 = scmp.lt.s32.totalorder %s11, 3
    %p189 = pnand %p187, %p188
    %p190 = pneg %p189
    // Predicated region
    $region37: #{mlp_forward.1} parent=5 // pred_check
      _
    $region38: #{mlp_forward.1} parent=5 // pred_check_branch
      %192 = sbr.rel (%p189) target = $region40
    $region39: #{mlp_forward.1} parent=5 // pred_region
      %s193 = ssub.s32 %s11, 1
      %s194 = smul.u32 16, %s16
      %p195 = scmp.lt.s32.totalorder %s194, 31
      %s196 = scalar_select %p195, %s194, 31
      %s197 = smul.addr %s196, 4
      %s198 = scalar_lea.vmem %s0, %s197
      %p199 = pneg %p37
      %p200 = pneg %p34
      %p201 = pneg %p58
      %p202 = pneg %p55
      %p203 = pneg %p79
      %p204 = pneg %p76
      %p205 = pneg %p100
      %p206 = pneg %p97
      %p207 = pneg %p121
      %p208 = pneg %p118
      %p209 = pneg %p147
      %p210 = pneg %p144
      %s211 = smul.u32 16, %s16
      %p212 = scmp.lt.s32.totalorder %s211, 31
      %s213 = scalar_select %p212, %s211, 31
      %s214 = smul.addr %s213, 8
      %s215 = scalar_lea.vmem %s5, %s214
      %s216 = smul.u32 16, %s16
      %p217 = scmp.lt.s32.totalorder %s216, 31
      %s218 = scalar_select %p217, %s216, 31
      %s219 = smul.addr %s218, 4
      %s220 = scalar_lea.vmem %s0, %s219
      %s221 = smul.u32 16, %s16
      %s222 = smul.u32 16, %s16
      %p223 = scmp.lt.s32.totalorder %s222, 31
      %s224 = scalar_select %p223, %s222, 31
      %s225 = smul.addr %s224, 8
      %s226 = scalar_lea.vmem %s5, %s225
      %s227 = smul.u32 16, %s16
      %v229 = vld [vmem:[%s220] sm:$0xf]
      %v230 = vld [vmem:[%s220 + $0x4] sm:$0xf]
      %v231 = vld [vmem:[%s220 + $0x8] sm:$0xf]
      %v232 = vld [vmem:[%s220 + $0xc] sm:$0xf]
      %v233 = vld [vmem:[%s220 + $0x10] sm:$0xf]
      %v234 = vld [vmem:[%s220 + $0x14] sm:$0xf]
      %v235 = vld [vmem:[%s220 + $0x18] sm:$0xf]
      %v236 = vld [vmem:[%s220 + $0x1c] sm:$0xf]
      %v237 = vld [vmem:[%s220 + $0x20] sm:$0xf]
      %v238 = vld [vmem:[%s220 + $0x24] sm:$0xf]
      %v239 = vld [vmem:[%s220 + $0x28] sm:$0xf]
      %v240 = vld [vmem:[%s220 + $0x2c] sm:$0xf]
      %v241 = vld [vmem:[%s220 + $0x30] sm:$0xf]
      %v242 = vld [vmem:[%s220 + $0x34] sm:$0xf]
      %v243 = vld [vmem:[%s220 + $0x38] sm:$0xf]
      %v244 = vld [vmem:[%s220 + $0x3c] sm:$0xf]
      %v245 = vld [vmem:[%s1] sm:$0xf]
      %v246 = vld [vmem:[%s1 + $0x4] sm:$0xf]
      %v247 = vld [vmem:[%s1 + $0x8] sm:$0xf]
      %v248 = vld [vmem:[%s1 + $0xc] sm:$0xf]
      %v249 = vld [vmem:[%s2] sm:$0x1]
      %v251 = vlaneseq
      %v252 = vshrl.u32 %v251, 7
      %v253 = vsub.s32 0, %v252
      %v254 = vrot.slane %v249, %v253
      %v272 = vunpack.c.l.b16 %v229
      %v273 = vunpack.c.l.b16 %v230
      %v274 = vunpack.c.l.b16 %v231
      %v275 = vunpack.c.l.b16 %v232
      %v276 = vunpack.c.l.b16 %v233
      %v277 = vunpack.c.l.b16 %v234
      %v278 = vunpack.c.l.b16 %v235
      %v279 = vunpack.c.l.b16 %v236
      %v280 = vunpack.c.l.b16 %v237
      %v281 = vunpack.c.l.b16 %v238
      %v282 = vunpack.c.l.b16 %v239
      %v283 = vunpack.c.l.b16 %v240
      %v284 = vunpack.c.l.b16 %v241
      %v285 = vunpack.c.l.b16 %v242
      %v286 = vunpack.c.l.b16 %v243
      %v287 = vunpack.c.l.b16 %v244
      %v288 = vpack.c.b16 %v273, %v272
      %v289 = vpack.c.b16 %v275, %v274
      %v290 = vpack.c.b16 %v277, %v276
      %v291 = vpack.c.b16 %v279, %v278
      %v292 = vpack.c.b16 %v281, %v280
      %v293 = vpack.c.b16 %v283, %v282
      %v294 = vpack.c.b16 %v285, %v284
      %v295 = vpack.c.b16 %v287, %v286
      %v300 = vunpack.c.l.b16 %v245
      %v301 = vunpack.c.l.b16 %v246
      %v302 = vunpack.c.l.b16 %v247
      %v303 = vunpack.c.l.b16 %v248
      %v304 = vpack.c.b16 %v301, %v300
      %v305 = vpack.c.b16 %v303, %v302
      %vm308 = vcmask 261120
      %v310 = vsel %vm308, %v288, 0
      %v313 = vsel %vm308, %v289, 0
      %v316 = vsel %vm308, %v290, 0
      %v319 = vsel %vm308, %v291, 0
      %v322 = vsel %vm308, %v292, 0
      %v325 = vsel %vm308, %v293, 0
      %v328 = vsel %vm308, %v294, 0
      %v331 = vsel %vm308, %v295, 0
      %333 = vmatprep.subr.bf16.mxu0 0
      %334 = vmatpush1.bf16.msra.mxu0 0
      %335 = vmatprep.subr.bf16.mxu0 0
      %336 = vmatpush1.bf16.msra.mxu0 0
      %337 = vmatprep.subr.bf16.mxu0 0
      %338 = vmatpush1.bf16.msra.mxu0 0
      %339 = vmatprep.subr.bf16.mxu0 0
      %340 = vmatpush1.bf16.msra.mxu0 0
      %341 = vmatprep.subr.bf16.mxu0 0
      %342 = vmatpush1.bf16.msra.mxu0 0
      %343 = vmatprep.subr.bf16.mxu0 0
      %344 = vmatpush1.bf16.msra.mxu0 0
      %345 = vmatprep.subr.bf16.mxu0 0
      %346 = vmatpush1.bf16.msra.mxu0 %v305
      %347 = vmatprep.subr.bf16.mxu0 0
      %348 = vmatpush1.bf16.msra.mxu0 %v304
      %349 = vmatprep.subr.bf16.mxu0 0
      %350 = vmatpush2.bf16.msra.mxu0 0
      %351 = vmatprep.subr.bf16.mxu0 0
      %352 = vmatpush2.bf16.msra.mxu0 0
      %353 = vmatprep.subr.bf16.mxu0 0
      %354 = vmatpush2.bf16.msra.mxu0 0
      %355 = vmatprep.subr.bf16.mxu0 0
      %356 = vmatpush2.bf16.msra.mxu0 0
      %357 = vmatprep.subr.bf16.mxu0 0
      %358 = vmatpush2.bf16.msra.mxu0 0
      %359 = vmatprep.subr.bf16.mxu0 0
      %360 = vmatpush2.bf16.msra.mxu0 0
      %361 = vmatprep.subr.bf16.mxu0 0
      %362 = vmatpush2.bf16.msra.mxu0 0
      %363 = vmatprep.subr.bf16.mxu0 0
      %364 = vmatpush2.bf16.msra.mxu0 0
      %365 = vmatprep.mubr.bf16.mxu0 0
      %366 = vmatmul.mubr.bf16.gmra.mxu0 %v310
      %v367 = vpop.f32.mrf.mxu0
      %v368 = vadd.f32 %v254, %v367
      %v369 = vpop.f32.mrf.mxu0
      %v370 = vpop.f32.mrf.mxu0
      %v371 = vadd.f32 %v254, %v370
      %v372 = vpop.f32.mrf.mxu0
      %373 = vmatprep.mubr.bf16.mxu0 0
      %374 = vmatmul.mubr.bf16.gmra.mxu0 %v313
      %v375 = vpop.f32.mrf.mxu0
      %v376 = vadd.f32 %v254, %v375
      %v377 = vpop.f32.mrf.mxu0
      %v378 = vpop.f32.mrf.mxu0
      %v379 = vadd.f32 %v254, %v378
      %v380 = vpop.f32.mrf.mxu0
      %381 = vmatprep.mubr.bf16.mxu0 0
      %382 = vmatmul.mubr.bf16.gmra.mxu0 %v316
      %v383 = vpop.f32.mrf.mxu0
      %v384 = vadd.f32 %v254, %v383
      %v385 = vpop.f32.mrf.mxu0
      %v386 = vpop.f32.mrf.mxu0
      %v387 = vadd.f32 %v254, %v386
      %v388 = vpop.f32.mrf.mxu0
      %389 = vmatprep.mubr.bf16.mxu0 0
      %390 = vmatmul.mubr.bf16.gmra.mxu0 %v319
      %v391 = vpop.f32.mrf.mxu0
      %v392 = vadd.f32 %v254, %v391
      %v393 = vpop.f32.mrf.mxu0
      %v394 = vpop.f32.mrf.mxu0
      %v395 = vadd.f32 %v254, %v394
      %v396 = vpop.f32.mrf.mxu0
      %397 = vmatprep.mubr.bf16.mxu0 0
      %398 = vmatmul.mubr.bf16.gmra.mxu0 %v322
      %v399 = vpop.f32.mrf.mxu0
      %v400 = vadd.f32 %v254, %v399
      %v401 = vpop.f32.mrf.mxu0
      %v402 = vpop.f32.mrf.mxu0
      %v403 = vadd.f32 %v254, %v402
      %v404 = vpop.f32.mrf.mxu0
      %405 = vmatprep.mubr.bf16.mxu0 0
      %406 = vmatmul.mubr.bf16.gmra.mxu0 %v325
      %v407 = vpop.f32.mrf.mxu0
      %v408 = vadd.f32 %v254, %v407
      %v409 = vpop.f32.mrf.mxu0
      %v410 = vpop.f32.mrf.mxu0
      %v411 = vadd.f32 %v254, %v410
      %v412 = vpop.f32.mrf.mxu0
      %413 = vmatprep.mubr.bf16.mxu0 0
      %414 = vmatmul.mubr.bf16.gmra.mxu0 %v328
      %v415 = vpop.f32.mrf.mxu0
      %v416 = vadd.f32 %v254, %v415
      %v417 = vpop.f32.mrf.mxu0
      %v418 = vpop.f32.mrf.mxu0
      %v419 = vadd.f32 %v254, %v418
      %v420 = vpop.f32.mrf.mxu0
      %421 = vmatprep.mubr.bf16.mxu0 0
      %422 = vmatmul.mubr.bf16.gmra.mxu0 %v331
      %v423 = vpop.f32.mrf.mxu0
      %v424 = vadd.f32 %v254, %v423
      %v425 = vpop.f32.mrf.mxu0
      %v426 = vpop.f32.mrf.mxu0
      %v427 = vadd.f32 %v254, %v426
      %v428 = vpop.f32.mrf.mxu0
      %429 = vdwg.mxu0
      %v430 = vxor.u32 %v368, 2147483648
      %v431 = vxor.u32 %v371, 2147483648
      %v432 = vxor.u32 %v376, 2147483648
      %v433 = vxor.u32 %v379, 2147483648
      %v434 = vxor.u32 %v384, 2147483648
      %v435 = vxor.u32 %v387, 2147483648
      %v436 = vxor.u32 %v392, 2147483648
      %v437 = vxor.u32 %v395, 2147483648
      %v438 = vxor.u32 %v400, 2147483648
      %v439 = vxor.u32 %v403, 2147483648
      %v440 = vxor.u32 %v408, 2147483648
      %v441 = vxor.u32 %v411, 2147483648
      %v442 = vxor.u32 %v416, 2147483648
      %v443 = vxor.u32 %v419, 2147483648
      %v444 = vxor.u32 %v424, 2147483648
      %v445 = vxor.u32 %v427, 2147483648
      %v446 = vmul.f32 %v430, 1.442695
      %v447 = vpow.pop %v446
      %v448 = vmul.f32 %v431, 1.442695
      %v449 = vpow.pop %v448
      %v450 = vmul.f32 %v432, 1.442695
      %v451 = vpow.pop %v450
      %v452 = vmul.f32 %v433, 1.442695
      %v453 = vpow.pop %v452
      %v454 = vmul.f32 %v434, 1.442695
      %v455 = vpow.pop %v454
      %v456 = vmul.f32 %v435, 1.442695
      %v457 = vpow.pop %v456
      %v458 = vmul.f32 %v436, 1.442695
      %v459 = vpow.pop %v458
      %v460 = vmul.f32 %v437, 1.442695
      %v461 = vpow.pop %v460
      %v462 = vmul.f32 %v438, 1.442695
      %v463 = vpow.pop %v462
      %v464 = vmul.f32 %v439, 1.442695
      %v465 = vpow.pop %v464
      %v466 = vmul.f32 %v440, 1.442695
      %v467 = vpow.pop %v466
      %v468 = vmul.f32 %v441, 1.442695
      %v469 = vpow.pop %v468
      %v470 = vmul.f32 %v442, 1.442695
      %v471 = vpow.pop %v470
      %v472 = vmul.f32 %v443, 1.442695
      %v473 = vpow.pop %v472
      %v474 = vmul.f32 %v444, 1.442695
      %v475 = vpow.pop %v474
      %v476 = vmul.f32 %v445, 1.442695
      %v477 = vpow.pop %v476
      %v478 = vadd.f32 %v447, 1.0
      %v479 = vadd.f32 %v449, 1.0
      %v480 = vadd.f32 %v451, 1.0
      %v481 = vadd.f32 %v453, 1.0
      %v482 = vadd.f32 %v455, 1.0
      %v483 = vadd.f32 %v457, 1.0
      %v484 = vadd.f32 %v459, 1.0
      %v485 = vadd.f32 %v461, 1.0
      %v486 = vadd.f32 %v463, 1.0
      %v487 = vadd.f32 %v465, 1.0
      %v488 = vadd.f32 %v467, 1.0
      %v489 = vadd.f32 %v469, 1.0
      %v490 = vadd.f32 %v471, 1.0
      %v491 = vadd.f32 %v473, 1.0
      %v492 = vadd.f32 %v475, 1.0
      %v493 = vadd.f32 %v477, 1.0
      %v494 = vrcp.pop %v478
      %v495 = vmul.f32 1.0, %v494
      %v496 = vrcp.pop %v479
      %v497 = vmul.f32 1.0, %v496
      %v498 = vrcp.pop %v480
      %v499 = vmul.f32 1.0, %v498
      %v500 = vrcp.pop %v481
      %v501 = vmul.f32 1.0, %v500
      %v502 = vrcp.pop %v482
      %v503 = vmul.f32 1.0, %v502
      %v504 = vrcp.pop %v483
      %v505 = vmul.f32 1.0, %v504
      %v506 = vrcp.pop %v484
      %v507 = vmul.f32 1.0, %v506
      %v508 = vrcp.pop %v485
      %v509 = vmul.f32 1.0, %v508
      %v510 = vrcp.pop %v486
      %v511 = vmul.f32 1.0, %v510
      %v512 = vrcp.pop %v487
      %v513 = vmul.f32 1.0, %v512
      %v514 = vrcp.pop %v488
      %v515 = vmul.f32 1.0, %v514
      %v516 = vrcp.pop %v489
      %v517 = vmul.f32 1.0, %v516
      %v518 = vrcp.pop %v490
      %v519 = vmul.f32 1.0, %v518
      %v520 = vrcp.pop %v491
      %v521 = vmul.f32 1.0, %v520
      %v522 = vrcp.pop %v492
      %v523 = vmul.f32 1.0, %v522
      %v524 = vrcp.pop %v493
      %v525 = vmul.f32 1.0, %v524
      %v526 = vpack.c.bf16 %v497, %v495
      %v527 = vpack.c.bf16 %v501, %v499
      %v528 = vpack.c.bf16 %v505, %v503
      %v529 = vpack.c.bf16 %v509, %v507
      %v530 = vpack.c.bf16 %v513, %v511
      %v531 = vpack.c.bf16 %v517, %v515
      %v532 = vpack.c.bf16 %v521, %v519
      %v533 = vpack.c.bf16 %v525, %v523
      %v534 = vld [vmem:[%s3] sm:$0xf]
      %v535 = vld [vmem:[%s3 + $0x4] sm:$0xf]
      %v536 = vld [vmem:[%s3 + $0x8] sm:$0xf]
      %v537 = vld [vmem:[%s3 + $0xc] sm:$0xf]
      %v538 = vld [vmem:[%s3 + $0x10] sm:$0xf]
      %v539 = vld [vmem:[%s3 + $0x14] sm:$0xf]
      %v540 = vld [vmem:[%s3 + $0x18] sm:$0xf]
      %v541 = vld [vmem:[%s3 + $0x1c] sm:$0xf]
      %v542 = vld [vmem:[%s3 + $0x20] sm:$0xf]
      %v543 = vld [vmem:[%s3 + $0x24] sm:$0xf]
      %v544 = vld [vmem:[%s3 + $0x28] sm:$0xf]
      %v545 = vld [vmem:[%s3 + $0x2c] sm:$0xf]
      %v546 = vld [vmem:[%s3 + $0x30] sm:$0xf]
      %v547 = vld [vmem:[%s3 + $0x34] sm:$0xf]
      %v548 = vld [vmem:[%s3 + $0x38] sm:$0xf]
      %v549 = vld [vmem:[%s3 + $0x3c] sm:$0xf]
      %v550 = vld [vmem:[%s4] sm:$0x1]
      %v552 = vlaneseq
      %v553 = vshrl.u32 %v552, 7
      %v554 = vsub.s32 0, %v553
      %v555 = vrot.slane %v550, %v554
      %v573 = vunpack.c.l.b16 %v534
      %v574 = vunpack.c.l.b16 %v535
      %v575 = vunpack.c.l.b16 %v536
      %v576 = vunpack.c.l.b16 %v537
      %v577 = vunpack.c.l.b16 %v538
      %v578 = vunpack.c.l.b16 %v539
      %v579 = vunpack.c.l.b16 %v540
      %v580 = vunpack.c.l.b16 %v541
      %v581 = vunpack.c.l.b16 %v542
      %v582 = vunpack.c.l.b16 %v543
      %v583 = vunpack.c.l.b16 %v544
      %v584 = vunpack.c.l.b16 %v545
      %v585 = vunpack.c.l.b16 %v546
      %v586 = vunpack.c.l.b16 %v547
      %v587 = vunpack.c.l.b16 %v548
      %v588 = vunpack.c.l.b16 %v549
      %v589 = vpack.c.b16 %v574, %v573
      %v590 = vpack.c.b16 %v576, %v575
      %v591 = vpack.c.b16 %v578, %v577
      %v592 = vpack.c.b16 %v580, %v579
      %v593 = vpack.c.b16 %v582, %v581
      %v594 = vpack.c.b16 %v584, %v583
      %v595 = vpack.c.b16 %v586, %v585
      %v596 = vpack.c.b16 %v588, %v587
      %605 = vmatprep.subr.bf16.mxu0 0
      %606 = vmatpush1.bf16.msra.mxu0 %v596
      %607 = vmatprep.subr.bf16.mxu0 0
      %608 = vmatpush1.bf16.msra.mxu0 %v595
      %609 = vmatprep.subr.bf16.mxu0 0
      %610 = vmatpush1.bf16.msra.mxu0 %v594
      %611 = vmatprep.subr.bf16.mxu0 0
      %612 = vmatpush1.bf16.msra.mxu0 %v593
      %613 = vmatprep.subr.bf16.mxu0 0
      %614 = vmatpush1.bf16.msra.mxu0 %v592
      %615 = vmatprep.subr.bf16.mxu0 0
      %616 = vmatpush1.bf16.msra.mxu0 %v591
      %617 = vmatprep.subr.bf16.mxu0 0
      %618 = vmatpush1.bf16.msra.mxu0 %v590
      %619 = vmatprep.subr.bf16.mxu0 0
      %620 = vmatpush1.bf16.msra.mxu0 %v589
      %621 = vmatprep.subr.bf16.mxu0 0
      %622 = vmatpush2.bf16.msra.mxu0 0
      %623 = vmatprep.subr.bf16.mxu0 0
      %624 = vmatpush2.bf16.msra.mxu0 0
      %625 = vmatprep.subr.bf16.mxu0 0
      %626 = vmatpush2.bf16.msra.mxu0 0
      %627 = vmatprep.subr.bf16.mxu0 0
      %628 = vmatpush2.bf16.msra.mxu0 0
      %629 = vmatprep.subr.bf16.mxu0 0
      %630 = vmatpush2.bf16.msra.mxu0 0
      %631 = vmatprep.subr.bf16.mxu0 0
      %632 = vmatpush2.bf16.msra.mxu0 0
      %633 = vmatprep.subr.bf16.mxu0 0
      %634 = vmatpush2.bf16.msra.mxu0 0
      %635 = vmatprep.subr.bf16.mxu0 0
      %636 = vmatpush2.bf16.msra.mxu0 0
      %637 = vmatprep.mubr.bf16.mxu0 0
      %638 = vmatmul.mubr.bf16.gmra.mxu0 %v526
      %v639 = vpop.f32.mrf.mxu0
      %v640 = vadd.f32 %v555, %v639
      %v641 = vpop.f32.mrf.mxu0
      %v642 = vpop.f32.mrf.mxu0
      %v643 = vadd.f32 %v555, %v642
      %v644 = vpop.f32.mrf.mxu0
      %645 = vmatprep.mubr.bf16.mxu0 0
      %646 = vmatmul.mubr.bf16.gmra.mxu0 %v527
      %v647 = vpop.f32.mrf.mxu0
      %v648 = vadd.f32 %v555, %v647
      %v649 = vpop.f32.mrf.mxu0
      %v650 = vpop.f32.mrf.mxu0
      %v651 = vadd.f32 %v555, %v650
      %v652 = vpop.f32.mrf.mxu0
      %653 = vmatprep.mubr.bf16.mxu0 0
      %654 = vmatmul.mubr.bf16.gmra.mxu0 %v528
      %v655 = vpop.f32.mrf.mxu0
      %v656 = vadd.f32 %v555, %v655
      %v657 = vpop.f32.mrf.mxu0
      %v658 = vpop.f32.mrf.mxu0
      %v659 = vadd.f32 %v555, %v658
      %v660 = vpop.f32.mrf.mxu0
      %661 = vmatprep.mubr.bf16.mxu0 0
      %662 = vmatmul.mubr.bf16.gmra.mxu0 %v529
      %v663 = vpop.f32.mrf.mxu0
      %v664 = vadd.f32 %v555, %v663
      %v665 = vpop.f32.mrf.mxu0
      %v666 = vpop.f32.mrf.mxu0
      %v667 = vadd.f32 %v555, %v666
      %v668 = vpop.f32.mrf.mxu0
      %669 = vmatprep.mubr.bf16.mxu0 0
      %670 = vmatmul.mubr.bf16.gmra.mxu0 %v530
      %v671 = vpop.f32.mrf.mxu0
      %v672 = vadd.f32 %v555, %v671
      %v673 = vpop.f32.mrf.mxu0
      %v674 = vpop.f32.mrf.mxu0
      %v675 = vadd.f32 %v555, %v674
      %v676 = vpop.f32.mrf.mxu0
      %677 = vmatprep.mubr.bf16.mxu0 0
      %678 = vmatmul.mubr.bf16.gmra.mxu0 %v531
      %v679 = vpop.f32.mrf.mxu0
      %v680 = vadd.f32 %v555, %v679
      %v681 = vpop.f32.mrf.mxu0
      %v682 = vpop.f32.mrf.mxu0
      %v683 = vadd.f32 %v555, %v682
      %v684 = vpop.f32.mrf.mxu0
      %685 = vmatprep.mubr.bf16.mxu0 0
      %686 = vmatmul.mubr.bf16.gmra.mxu0 %v532
      %v687 = vpop.f32.mrf.mxu0
      %v688 = vadd.f32 %v555, %v687
      %v689 = vpop.f32.mrf.mxu0
      %v690 = vpop.f32.mrf.mxu0
      %v691 = vadd.f32 %v555, %v690
      %v692 = vpop.f32.mrf.mxu0
      %693 = vmatprep.mubr.bf16.mxu0 0
      %694 = vmatmul.mubr.bf16.gmra.mxu0 %v533
      %v695 = vpop.f32.mrf.mxu0
      %v696 = vadd.f32 %v555, %v695
      %v697 = vpop.f32.mrf.mxu0
      %v698 = vpop.f32.mrf.mxu0
      %v699 = vadd.f32 %v555, %v698
      %v700 = vpop.f32.mrf.mxu0
      %701 = vdwg.mxu0
      %v702 = vxor.u32 %v640, 2147483648
      %v703 = vxor.u32 %v643, 2147483648
      %v704 = vxor.u32 %v648, 2147483648
      %v705 = vxor.u32 %v651, 2147483648
      %v706 = vxor.u32 %v656, 2147483648
      %v707 = vxor.u32 %v659, 2147483648
      %v708 = vxor.u32 %v664, 2147483648
      %v709 = vxor.u32 %v667, 2147483648
      %v710 = vxor.u32 %v672, 2147483648
      %v711 = vxor.u32 %v675, 2147483648
      %v712 = vxor.u32 %v680, 2147483648
      %v713 = vxor.u32 %v683, 2147483648
      %v714 = vxor.u32 %v688, 2147483648
      %v715 = vxor.u32 %v691, 2147483648
      %v716 = vxor.u32 %v696, 2147483648
      %v717 = vxor.u32 %v699, 2147483648
      %v718 = vmul.f32 %v702, 1.442695
      %v719 = vpow.pop %v718
      %v720 = vmul.f32 %v703, 1.442695
      %v721 = vpow.pop %v720
      %v722 = vmul.f32 %v704, 1.442695
      %v723 = vpow.pop %v722
      %v724 = vmul.f32 %v705, 1.442695
      %v725 = vpow.pop %v724
      %v726 = vmul.f32 %v706, 1.442695
      %v727 = vpow.pop %v726
      %v728 = vmul.f32 %v707, 1.442695
      %v729 = vpow.pop %v728
      %v730 = vmul.f32 %v708, 1.442695
      %v731 = vpow.pop %v730
      %v732 = vmul.f32 %v709, 1.442695
      %v733 = vpow.pop %v732
      %v734 = vmul.f32 %v710, 1.442695
      %v735 = vpow.pop %v734
      %v736 = vmul.f32 %v711, 1.442695
      %v737 = vpow.pop %v736
      %v738 = vmul.f32 %v712, 1.442695
      %v739 = vpow.pop %v738
      %v740 = vmul.f32 %v713, 1.442695
      %v741 = vpow.pop %v740
      %v742 = vmul.f32 %v714, 1.442695
      %v743 = vpow.pop %v742
      %v744 = vmul.f32 %v715, 1.442695
      %v745 = vpow.pop %v744
      %v746 = vmul.f32 %v716, 1.442695
      %v747 = vpow.pop %v746
      %v748 = vmul.f32 %v717, 1.442695
      %v749 = vpow.pop %v748
      %v750 = vadd.f32 %v719, 1.0
      %v751 = vadd.f32 %v721, 1.0
      %v752 = vadd.f32 %v723, 1.0
      %v753 = vadd.f32 %v725, 1.0
      %v754 = vadd.f32 %v727, 1.0
      %v755 = vadd.f32 %v729, 1.0
      %v756 = vadd.f32 %v731, 1.0
      %v757 = vadd.f32 %v733, 1.0
      %v758 = vadd.f32 %v735, 1.0
      %v759 = vadd.f32 %v737, 1.0
      %v760 = vadd.f32 %v739, 1.0
      %v761 = vadd.f32 %v741, 1.0
      %v762 = vadd.f32 %v743, 1.0
      %v763 = vadd.f32 %v745, 1.0
      %v764 = vadd.f32 %v747, 1.0
      %v765 = vadd.f32 %v749, 1.0
      %v766 = vrcp.pop %v750
      %v767 = vmul.f32 1.0, %v766
      %v768 = vrcp.pop %v751
      %v769 = vmul.f32 1.0, %v768
      %v770 = vrcp.pop %v752
      %v771 = vmul.f32 1.0, %v770
      %v772 = vrcp.pop %v753
      %v773 = vmul.f32 1.0, %v772
      %v774 = vrcp.pop %v754
      %v775 = vmul.f32 1.0, %v774
      %v776 = vrcp.pop %v755
      %v777 = vmul.f32 1.0, %v776
      %v778 = vrcp.pop %v756
      %v779 = vmul.f32 1.0, %v778
      %v780 = vrcp.pop %v757
      %v781 = vmul.f32 1.0, %v780
      %v782 = vrcp.pop %v758
      %v783 = vmul.f32 1.0, %v782
      %v784 = vrcp.pop %v759
      %v785 = vmul.f32 1.0, %v784
      %v786 = vrcp.pop %v760
      %v787 = vmul.f32 1.0, %v786
      %v788 = vrcp.pop %v761
      %v789 = vmul.f32 1.0, %v788
      %v790 = vrcp.pop %v762
      %v791 = vmul.f32 1.0, %v790
      %v792 = vrcp.pop %v763
      %v793 = vmul.f32 1.0, %v792
      %v794 = vrcp.pop %v764
      %v795 = vmul.f32 1.0, %v794
      %v796 = vrcp.pop %v765
      %v797 = vmul.f32 1.0, %v796
      %798 = vst [vmem:[%s226] sm:$0xff] %v767
      %799 = vst [vmem:[%s226 + $0x8] sm:$0xff] %v769
      %800 = vst [vmem:[%s226 + $0x10] sm:$0xff] %v771
      %801 = vst [vmem:[%s226 + $0x18] sm:$0xff] %v773
      %802 = vst [vmem:[%s226 + $0x20] sm:$0xff] %v775
      %803 = vst [vmem:[%s226 + $0x28] sm:$0xff] %v777
      %804 = vst [vmem:[%s226 + $0x30] sm:$0xff] %v779
      %805 = vst [vmem:[%s226 + $0x38] sm:$0xff] %v781
      %806 = vst [vmem:[%s226 + $0x40] sm:$0xff] %v783
      %807 = vst [vmem:[%s226 + $0x48] sm:$0xff] %v785
      %808 = vst [vmem:[%s226 + $0x50] sm:$0xff] %v787
      %809 = vst [vmem:[%s226 + $0x58] sm:$0xff] %v789
      %810 = vst [vmem:[%s226 + $0x60] sm:$0xff] %v791
      %811 = vst [vmem:[%s226 + $0x68] sm:$0xff] %v793
      %812 = vst [vmem:[%s226 + $0x70] sm:$0xff] %v795
      %813 = vst [vmem:[%s226 + $0x78] sm:$0xff] %v797
      %s814 = smul.u32 16, %s16
      %p815 = scmp.lt.s32.totalorder %s814, 31
      %s816 = scalar_select %p815, %s814, 31
      %s817 = smul.addr %s816, 8
      %s818 = scalar_lea.vmem %s5, %s817
      // Predicated region
      $region41: #{mlp_forward.1} parent=39 // pred_check
        %p819 = pneg %p144
      $region42: #{mlp_forward.1} parent=39 // pred_check_branch
        %821 = sbr.rel (%p819) target = $region44
      $region43: #{mlp_forward.1} parent=39 // pred_region
        %s822 = smul.u32 16, %s16
      $region44: #{mlp_forward.1} parent=39 // pred_fallthru
        _
    $region40: #{mlp_forward.1} parent=5 // pred_fallthru
      _
    %p823 = scmp.le.s32.totalorder 2, %s11
    // Predicated region
    $region45: #{mlp_forward.1} parent=5 // pred_check
      %p824 = pneg %p823
    $region46: #{mlp_forward.1} parent=5 // pred_check_branch
      %826 = sbr.rel (%p824) target = $region48
    $region47: #{mlp_forward.1} parent=5 // pred_region
      %s827 = ssub.s32 %s11, 2
      // Predicated region
      $region49: #{mlp_forward.1} parent=47 // pred_check
        %p828 = pneg %p150
      $region50: #{mlp_forward.1} parent=47 // pred_check_branch
        %830 = sbr.rel (%p828) target = $region52
      $region51: #{mlp_forward.1} parent=47 // pred_region
        %s831 = smul.u32 16, %s17
        %p832 = scmp.lt.s32.totalorder %s831, 31
        %s833 = scalar_select %p832, %s831, 31
        %s834 = smul.addr %s833, 8
        %s835 = scalar_lea.vmem %s5, %s834
      $region52: #{mlp_forward.1} parent=47 // pred_fallthru
        _
    $region48: #{mlp_forward.1} parent=5 // pred_fallthru
      _
  $region6: #{mlp_forward.1} parent=0 // loop_footer
    %s15 = sadd.s32 1, %s11
  $region7: #{mlp_forward.1} parent=0 // loop_footer_branch
    %10 = sbr.rel target = $region3
  $region8: #{mlp_forward.1} parent=0 // loop_exit
    _

</llo_original>
